<compile_context>
chip_gen: v7x
topology: tpu7x:2x2x1
jax: 0.10.0
libtpu: 0.0.40
codegen_flags: <defaults>
</compile_context>

<pallas_src>
import functools
import re
from typing import NamedTuple

import jax
import jax.numpy as jnp
from jax import lax
from jax.experimental import pallas as pl
from jax.experimental.pallas import tpu as pltpu


def _round_up(x, m):
    return ((x + m - 1) // m) * m


@functools.lru_cache(maxsize=1)
def _tpu_generation():
    """Best-effort TPU generation (4/5/6/7) from device_kind; defaults to 6."""
    try:
        dev = jax.devices()[0]
        if dev.platform != "tpu":
            return 6
        m = re.search(r"(\d+)", dev.device_kind)
        return int(m.group(1)) if m else 6
    except Exception:  # pragma: no cover - defensive
        return 6


def _gen_config():
    gen = _tpu_generation()
    if gen >= 7:
        # v7x: 64 MiB VMEM per TC, 2 TCs/chip, 2x256 MXU, ~3.2 TB/s HBM.
        return dict(tm_cap=512, tn=1024, tk=1024, lane_mult=256,
                    vmem_limit=48 * 1024 * 1024, vmem_cap=56 * 1024 * 1024, two_tc=True)
    if gen == 6:
        # v6e: 128 MiB VMEM, 2x256 MXU, ~1.4 TB/s HBM.
        return dict(tm_cap=1024, tn=1024, tk=2048, lane_mult=256,
                    vmem_limit=100 * 1024 * 1024, vmem_cap=112 * 1024 * 1024, two_tc=False)
    # v5e and older: 128 MiB VMEM, 4x128 MXU, ~820 GB/s HBM -> biggest tiles win.
    # (If a profile shows exposed weight DMA on v5e, pipeline_mode=pl.Buffered(3) on the
    #  weight BlockSpec is a further knob; left off by default.)
    return dict(tm_cap=1024, tn=2048, tk=2048, lane_mult=128,
                vmem_limit=100 * 1024 * 1024, vmem_cap=112 * 1024 * 1024, two_tc=False)


class LinearParams(NamedTuple):
    w_kn: jax.Array   # (Kp, Np) compute dtype, MXU-native (in, out) layout, tile-padded
    b_pad: jax.Array  # (1, Np)  float32, tile-padded
    in_dim: int
    out_dim: int
    tn: int
    tk: int


def prepare_linear_params(weight, bias, *, compute_dtype=jnp.bfloat16, tn=None, tk=None):
    """One-time weight preparation (call once, reuse across forward calls).

    weight: (out_dim, in_dim) f32  -- PyTorch nn.Linear layout
    bias:   (out_dim,)        f32

    Casts to the compute dtype, transposes to the MXU-native RHS layout (in_dim, out_dim)
    and pads to tile multiples so the hot path does zero wrapper-side weight HBM traffic.
    """
    N, K = weight.shape
    cfg = _gen_config()
    if tn is None:
        tn = min(cfg["tn"], _round_up(N, cfg["lane_mult"]))
    if tk is None:
        tk = min(cfg["tk"], _round_up(K, cfg["lane_mult"]))
    assert tn % 128 == 0 and tk % 128 == 0, "tiles must be lane/sublane aligned"

    Np, Kp = _round_up(N, tn), _round_up(K, tk)
    w_kn = weight.astype(compute_dtype).T                      # (K, N) MXU-native
    if (Kp, Np) != (K, N):
        w_kn = jnp.pad(w_kn, ((0, Kp - K), (0, Np - N)))       # zero K-pad: no contribution
    b_pad = bias.astype(jnp.float32).reshape(1, N)
    if Np != N:
        b_pad = jnp.pad(b_pad, ((0, 0), (0, Np - N)))
    return LinearParams(w_kn=w_kn, b_pad=b_pad, in_dim=K, out_dim=N, tn=tn, tk=tk)


def _linear_kernel(x_ref, w_ref, b_ref, o_ref):
    # x_ref: (tm, tk) bf16   activation tile
    # w_ref: (tk, tn) bf16   weight tile, (K, N) layout -> contracted on dim 0, no transposes
    # b_ref: (1,  tn) f32    bias tile
    # o_ref: (tm, tn) f32    output tile; resident in VMEM across the K grid axis, so it
    #                        doubles as the f32 accumulator (no scratch, no finalize copy).
    @pl.when(pl.program_id(2) == 0)
    def _init():
        o_ref[...] = jnp.broadcast_to(b_ref[...], o_ref.shape)

    o_ref[...] += jnp.dot(x_ref[...], w_ref[...], preferred_element_type=jnp.float32)


def linear_forward(x, params: LinearParams, *, tm=None, force_pallas=False,
                   compute_dtype=jnp.bfloat16):
    """y = x @ weight.T + bias  (exact nn.Linear semantics; bf16 compute / f32 accumulate)."""
    orig_shape = x.shape
    if x.ndim != 2:
        x = x.reshape(-1, orig_shape[-1])
    B, K = x.shape
    assert K == params.in_dim, "input feature dim mismatch"
    N = params.out_dim
    tn, tk = params.tn, params.tk
    Kp, Np = params.w_kn.shape
    cfg = _gen_config()

    if tm is None:
        # Cover the whole padded batch with one M tile when it fits: the weight is then
        # streamed from HBM exactly once (roofline minimum for the memory-bound regime).
        tm = min(cfg["tm_cap"], _round_up(B, 8))
    assert tm % 8 == 0, "M tile must be a multiple of 8 (sublanes)"
    Mp = _round_up(B, tm)

    # Small-problem fallback: if the kernel would be a single tiny tile or padding multiplies
    # the real work by >4x, launch overhead dominates and XLA's fused matmul wins.
    real_flops = 2 * B * N * K
    padded_flops = 2 * Mp * Np * Kp
    single_tile = (Mp == tm and Np == tn and Kp == tk)
    if not force_pallas and (single_tile or padded_flops > 4 * real_flops):
        y = jnp.dot(x.astype(compute_dtype), params.w_kn[:K, :N],
                    preferred_element_type=jnp.float32) + params.b_pad[0, :N]
        return y.reshape(*orig_shape[:-1], N) if len(orig_shape) != 2 else y

    # v7x has two TensorCores: make sure at least one "parallel" grid axis has >= 2 blocks.
    if cfg["two_tc"] and (Mp // tm) * (Np // tn) == 1:
        if tn >= 256:
            tn //= 2
        elif tm % 16 == 0:
            tm //= 2

    x_c = x.astype(compute_dtype)
    if (Mp, Kp) != (B, K):
        x_c = jnp.pad(x_c, ((0, Mp - B), (0, Kp - K)))   # zero K-pad contributes nothing

    grid = (Mp // tm, Np // tn, Kp // tk)

    # HBM traffic as the pipeline actually incurs it: x is re-streamed once per N-block row,
    # the weight once per M-block column.
    itm = jnp.dtype(compute_dtype).itemsize
    bytes_accessed = ((Np // tn) * x_c.size * itm
                      + (Mp // tm) * params.w_kn.size * itm
                      + params.b_pad.size * 4
                      + Mp * Np * 4)
    cost = pl.CostEstimate(flops=padded_flops, transcendentals=0,
                           bytes_accessed=bytes_accessed)

    # Keep the scoped-VMEM limit above what the double-buffered tiles need, within the
    # generation's physical budget.
    vmem_needed = 2 * (tm * tk * itm + tk * tn * itm + tm * tn * 4 + tn * 4)
    vmem_limit = min(max(cfg["vmem_limit"], int(vmem_needed * 1.25)), cfg["vmem_cap"])

    out_p = pl.pallas_call(
        _linear_kernel,
        out_shape=jax.ShapeDtypeStruct((Mp, Np), jnp.float32),
        grid_spec=pltpu.PrefetchScalarGridSpec(
            num_scalar_prefetch=0,
            grid=grid,
            in_specs=[
                pl.BlockSpec((tm, tk), lambda i, j, k: (i, k)),   # activations
                pl.BlockSpec((tk, tn), lambda i, j, k: (k, j)),   # weight, (K, N) layout
                pl.BlockSpec((1, tn), lambda i, j, k: (0, j)),    # bias
            ],
            out_specs=pl.BlockSpec((tm, tn), lambda i, j, k: (i, j)),
        ),
        compiler_params=pltpu.CompilerParams(
            dimension_semantics=("parallel", "parallel", "arbitrary"),
            vmem_limit_bytes=int(vmem_limit),
        ),
        cost_estimate=cost,
    )(x_c, params.w_kn, params.b_pad)

    y = out_p[:B, :N] if (Mp, Np) != (B, N) else out_p
    return y.reshape(*orig_shape[:-1], N) if len(orig_shape) != 2 else y


if __name__ == "__main__":
    key = jax.random.PRNGKey(0)

    # --- Case 1: shapes implied by the module (Linear(in_dim=32, out_dim=16), batch=8). ---
    B, in_dim, out_dim = 8, 32, 16
    k1, k2, k3, key = jax.random.split(key, 4)
    bound = 1.0 / (in_dim ** 0.5)
    weight = jax.random.uniform(k2, (out_dim, in_dim), jnp.float32, -bound, bound)
    bias = jax.random.uniform(k3, (out_dim,), jnp.float32, -bound, bound)
    x = jax.random.normal(k1, (B, in_dim), jnp.float32)

    params = prepare_linear_params(weight, bias)          # one-time cast/transpose/pad
    y = linear_forward(x, params, force_pallas=True)      # exercise the Pallas path
    jax.block_until_ready(y)
    assert y.shape == (B, out_dim)

    # Tight check vs a reference that matches the kernel's bf16-input / f32-accumulate compute.
    y_ref = jnp.dot(x.astype(jnp.bfloat16).astype(jnp.float32),
                    weight.astype(jnp.bfloat16).astype(jnp.float32).T,
                    precision=lax.Precision.HIGHEST) + bias
    assert jnp.allclose(y, y_ref, atol=1e-3, rtol=1e-3), float(jnp.max(jnp.abs(y - y_ref)))
    # Loose check vs the pure-f32 nn.Linear reference (bf16 compute precision trade).
    assert jnp.allclose(y, x @ weight.T + bias, atol=5e-2, rtol=5e-2)

    # --- Case 2: explicit small tiles -> multi-block grid (2, 2, 4) to exercise the
    #             K-axis accumulation into the resident output tile and bias-once init. ---
    B2, K2, N2 = 16, 512, 256
    k1, k2, k3, key = jax.random.split(key, 4)
    w2 = jax.random.normal(k2, (N2, K2), jnp.float32) * 0.02
    b2 = jax.random.normal(k3, (N2,), jnp.float32) * 0.02
    x2 = jax.random.normal(k1, (B2, K2), jnp.float32)

    params2 = prepare_linear_params(w2, b2, tn=128, tk=128)
    y2 = linear_forward(x2, params2, tm=8, force_pallas=True)
    jax.block_until_ready(y2)
    y2_ref = jnp.dot(x2.astype(jnp.bfloat16).astype(jnp.float32),
                     w2.astype(jnp.bfloat16).astype(jnp.float32).T,
                     precision=lax.Precision.HIGHEST) + b2
    assert jnp.allclose(y2, y2_ref, atol=2e-3, rtol=2e-3), float(jnp.max(jnp.abs(y2 - y2_ref)))

    print("KERNEL_OK")
</pallas_src>

<mosaic_0001>
module attributes {stable_mosaic.version = 11 : i64} {
  func.func @_linear_kernel(%arg0: i32, %arg1: i32, %arg2: i32, %arg3: memref<8x256xbf16, #tpu.memory_space<vmem>>, %arg4: memref<256x256xbf16, #tpu.memory_space<vmem>>, %arg5: memref<1x256xf32, #tpu.memory_space<vmem>>, %arg6: memref<8x256xf32, #tpu.memory_space<vmem>>) attributes {dimension_semantics = [#tpu.dimension_semantics<parallel>, #tpu.dimension_semantics<parallel>, #tpu.dimension_semantics<arbitrary>], iteration_bounds = array<i64: 1, 1, 1>, scalar_prefetch = 0 : i64, scratch_operands = 0 : i64, tpu.core_type = #tpu.core_type<tc>, window_params = [{transform_indices = @transform_0, window_bounds = array<i64: 8, 256>}, {transform_indices = @transform_1, window_bounds = array<i64: 256, 256>}, {transform_indices = @transform_2, window_bounds = array<i64: 1, 256>}, {transform_indices = @transform_3, window_bounds = array<i64: 8, 256>}]} {
    %c0_i32 = arith.constant 0 : i32
    %0 = arith.cmpi eq, %arg2, %c0_i32 : i32
    %1 = arith.extui %0 : i1 to i32
    %c0_i32_0 = arith.constant 0 : i32
    %2 = arith.cmpi ne, %1, %c0_i32_0 : i32
    scf.if %2 {
      %c0_8 = arith.constant 0 : index
      %c0_9 = arith.constant 0 : index
      %9 = vector.load %arg5[%c0_8, %c0_9] : memref<1x256xf32, #tpu.memory_space<vmem>>, vector<1x256xf32>
      %10 = vector.shape_cast %9 : vector<1x256xf32> to vector<1x256xf32>
      %11 = vector.broadcast %10 : vector<1x256xf32> to vector<8x256xf32>
      %c0_10 = arith.constant 0 : index
      %c0_11 = arith.constant 0 : index
      %12 = vector.load %arg6[%c0_10, %c0_11] : memref<8x256xf32, #tpu.memory_space<vmem>>, vector<8x256xf32>
      tpu.vector_store %arg6[%c0_10, %c0_11], %11 {strides = array<i32>} : memref<8x256xf32, #tpu.memory_space<vmem>>, vector<8x256xf32>,
    } else {
    }
    %c0 = arith.constant 0 : index
    %c0_1 = arith.constant 0 : index
    %3 = vector.load %arg6[%c0, %c0_1] : memref<8x256xf32, #tpu.memory_space<vmem>>, vector<8x256xf32>
    %c0_2 = arith.constant 0 : index
    %c0_3 = arith.constant 0 : index
    %4 = vector.load %arg3[%c0_2, %c0_3] : memref<8x256xbf16, #tpu.memory_space<vmem>>, vector<8x256xbf16>
    %c0_4 = arith.constant 0 : index
    %c0_5 = arith.constant 0 : index
    %5 = vector.load %arg4[%c0_4, %c0_5] : memref<256x256xbf16, #tpu.memory_space<vmem>>, vector<256x256xbf16>
    %cst = arith.constant dense<0.000000e+00> : vector<8x256xf32>
    %6 = tpu.matmul %4, %5, %cst {dimension_numbers = #tpu.dot_dimension_numbers<[1], [0], [0], [1], [0, 0, 1, 1], [], []>} : vector<8x256xbf16>, vector<256x256xbf16>, vector<8x256xf32> -> vector<8x256xf32>
    %7 = arith.addf %3, %6 : vector<8x256xf32>
    %c0_6 = arith.constant 0 : index
    %c0_7 = arith.constant 0 : index
    %8 = vector.load %arg6[%c0_6, %c0_7] : memref<8x256xf32, #tpu.memory_space<vmem>>, vector<8x256xf32>
    tpu.vector_store %arg6[%c0_6, %c0_7], %7 {strides = array<i32>} : memref<8x256xf32, #tpu.memory_space<vmem>>, vector<8x256xf32>,
    return
  }
  func.func @transform_0(%arg0: i32, %arg1: i32, %arg2: i32) -> (i32, i32) {
    %c0_i32 = arith.constant 0 : i32
    return %arg0, %arg2 : i32, i32
  }
  func.func @transform_1(%arg0: i32, %arg1: i32, %arg2: i32) -> (i32, i32) {
    %c0_i32 = arith.constant 0 : i32
    return %arg2, %arg1 : i32, i32
  }
  func.func @transform_2(%arg0: i32, %arg1: i32, %arg2: i32) -> (i32, i32) {
    %c0_i32 = arith.constant 0 : i32
    %c0_i32_0 = arith.constant 0 : i32
    return %c0_i32, %arg1 : i32, i32
  }
  func.func @transform_3(%arg0: i32, %arg1: i32, %arg2: i32) -> (i32, i32) {
    %c0_i32 = arith.constant 0 : i32
    return %arg0, %arg1 : i32, i32
  }
}

</mosaic_0001>

<llo_original>
// kernel: tpu_custom_call.1
$region0: #{tpu_custom_call.1}
  #allocation0 [shape = 'u32[]', space=smem, size = 0x4, offset = 0x4, fixed_abs, tag = 'smem constant byte address 0x4 - core index']
  #allocation1 [shape = 'u32[144,128]{1,0:T(1,128)}', space=vmem, size = 0x12000, scoped, tag = 'internal scratch']
  %s0 = inlined_call_operand.hbm [shape: bf16[8,256], index: 0, kind: input, shape index: {}]
  %s1 = inlined_call_operand.hbm [shape: bf16[256,256], index: 1, kind: input, shape index: {}]
  %s2 = inlined_call_operand.hbm [shape: f32[1,256], index: 2, kind: input, shape index: {}]
  %s3 = inlined_call_operand.hbm [shape: f32[8,256], index: 3, kind: output, shape index: {}]
  %s4 = sld [smem:[#allocation0]]
  $region38: #{tpu_custom_call.1} parent=0
    _
  %s6 = ssub.s32 1, %s4
  %s7 = scalar_select 0, %s6, %s4
  $region1: #{tpu_custom_call.1} parent=0
    #allocation2 [shape = 'u8[4096]{0}', space=vmem, size = 0x1000, scoped, tag = 'input window, operand 0, single buffered']
    #allocation3 [shape = 's32[1]{0}', space=sflag, size = 0x4, scoped, tag = 'scoped memory for tpu_custom_call.1']
    #allocation4 [shape = 's32[1]{0}', space=sflag, size = 0x4, scoped, tag = 'scoped memory for tpu_custom_call.1']
    #allocation5 [shape = 'u8[131072]{0}', space=vmem, size = 0x20000, scoped, tag = 'input window, operand 1, single buffered']
    #allocation6 [shape = 's32[1]{0}', space=sflag, size = 0x4, scoped, tag = 'scoped memory for tpu_custom_call.1']
    #allocation7 [shape = 'u8[1024]{0}', space=vmem, size = 0x400, scoped, tag = 'input window, operand 2, single buffered']
    #allocation8 [shape = 'u8[8192]{0}', space=vmem, size = 0x2000, scoped, tag = 'output window, operand 0, single buffered']
    %8 = vsyncpa [#allocation3], 0
    %9 = vsyncpa [#allocation6], 0
    %10 = vsyncpa [#allocation4], 0
    // Predicated region
    $region2: #{tpu_custom_call.1} parent=1 // pred_check
      _
    $region3: #{tpu_custom_call.1} parent=1 // pred_check_branch
      %12 = sbr.rel (0) target = $region5
    $region4: #{tpu_custom_call.1} parent=1 // pred_region
      %s14 = ssub.s32 128, 128
      %15 = vsyncadd [#allocation3], %s14
      %s17 = sshll.u32 [#allocation2], 4
      %s18 = int_to_ptr.vmem [resolvable:$true] %s17
      %20 = dma.hbm_to_vmem [thread:$0]  %s0, 128, %s18, [#allocation3]
    $region5: #{tpu_custom_call.1} parent=1 // pred_fallthru
      _
    // Predicated region
    $region6: #{tpu_custom_call.1} parent=1 // pred_check
      _
    $region7: #{tpu_custom_call.1} parent=1 // pred_check_branch
      %22 = sbr.rel (0) target = $region9
    $region8: #{tpu_custom_call.1} parent=1 // pred_region
      %s24 = ssub.s32 4096, 4096
      %25 = vsyncadd [#allocation6], %s24
      %s26 = sshll.u32 [#allocation5], 4
      %s27 = int_to_ptr.vmem [resolvable:$true] %s26
      %32 = dma.hbm_to_vmem [thread:$0]  %s1, 4096, %s27, [#allocation6], 128, 128, 8
    $region9: #{tpu_custom_call.1} parent=1 // pred_fallthru
      _
    // Predicated region
    $region10: #{tpu_custom_call.1} parent=1 // pred_check
      _
    $region11: #{tpu_custom_call.1} parent=1 // pred_check_branch
      %34 = sbr.rel (0) target = $region13
    $region12: #{tpu_custom_call.1} parent=1 // pred_region
      %s36 = ssub.s32 32, 32
      %37 = vsyncadd [#allocation6], %s36
      %s39 = sshll.u32 [#allocation7], 4
      %s40 = int_to_ptr.vmem [resolvable:$true] %s39
      %42 = dma.hbm_to_vmem [thread:$0]  %s2, 32, %s40, [#allocation6]
    $region13: #{tpu_custom_call.1} parent=1 // pred_fallthru
      _
    // Predicated region
    $region14: #{tpu_custom_call.1} parent=1 // pred_check
      _
    $region15: #{tpu_custom_call.1} parent=1 // pred_check_branch
      %44 = sbr.rel (0) target = $region17
    $region16: #{tpu_custom_call.1} parent=1 // pred_region
      %45 = dma.done [#allocation3], 128
    $region17: #{tpu_custom_call.1} parent=1 // pred_fallthru
      _
    // Predicated region
    $region18: #{tpu_custom_call.1} parent=1 // pred_check
      _
    $region19: #{tpu_custom_call.1} parent=1 // pred_check_branch
      %47 = sbr.rel (0) target = $region21
    $region20: #{tpu_custom_call.1} parent=1 // pred_region
      %48 = dma.done [#allocation6], 4096
    $region21: #{tpu_custom_call.1} parent=1 // pred_fallthru
      _
    // Predicated region
    $region22: #{tpu_custom_call.1} parent=1 // pred_check
      _
    $region23: #{tpu_custom_call.1} parent=1 // pred_check_branch
      %50 = sbr.rel (0) target = $region25
    $region24: #{tpu_custom_call.1} parent=1 // pred_region
      %51 = dma.done [#allocation6], 32
    $region25: #{tpu_custom_call.1} parent=1 // pred_fallthru
      _
    %p52 = scmp.eq.s32.totalorder 0, 0
    // Predicated region
    $region26: #{tpu_custom_call.1} parent=1 // pred_check
      %p53 = pneg %p52
    $region27: #{tpu_custom_call.1} parent=1 // pred_check_branch
      %55 = sbr.rel (%p53) target = $region29
    $region28: #{tpu_custom_call.1} parent=1 // pred_region
      %v56 = vld [vmem:[#allocation7] sm:$0x3]
      %v58 = vlaneseq
      %v59 = vshrl.u32 %v58, 7
      %v60 = vsub.s32 0, %v59
      %v61 = vrot.slane %v56, %v60
      %v62 = vlaneseq
      %v63 = vshrl.u32 %v62, 7
      %v64 = vsub.s32 1, %v63
      %v65 = vrot.slane %v56, %v64
      %68 = vst [vmem:[#allocation8] sm:$0xff] %v61
      %69 = vst [vmem:[#allocation8 + $0x8] sm:$0xff] %v65
    $region29: #{tpu_custom_call.1} parent=1 // pred_fallthru
      _
    %v70 = vld [vmem:[#allocation8] sm:$0xff]
    %v71 = vld [vmem:[#allocation8 + $0x8] sm:$0xff]
    %v72 = vld [vmem:[#allocation2] sm:$0xff]
    %v73 = vld [vmem:[#allocation5] sm:$0xff]
    %v74 = vld [vmem:[#allocation5 + $0x8] sm:$0xff]
    %v75 = vld [vmem:[#allocation5 + $0x10] sm:$0xff]
    %v76 = vld [vmem:[#allocation5 + $0x18] sm:$0xff]
    %v77 = vld [vmem:[#allocation5 + $0x20] sm:$0xff]
    %v78 = vld [vmem:[#allocation5 + $0x28] sm:$0xff]
    %v79 = vld [vmem:[#allocation5 + $0x30] sm:$0xff]
    %v80 = vld [vmem:[#allocation5 + $0x38] sm:$0xff]
    %v81 = vld [vmem:[#allocation5 + $0x40] sm:$0xff]
    %v82 = vld [vmem:[#allocation5 + $0x48] sm:$0xff]
    %v83 = vld [vmem:[#allocation5 + $0x50] sm:$0xff]
    %v84 = vld [vmem:[#allocation5 + $0x58] sm:$0xff]
    %v85 = vld [vmem:[#allocation5 + $0x60] sm:$0xff]
    %v86 = vld [vmem:[#allocation5 + $0x68] sm:$0xff]
    %v87 = vld [vmem:[#allocation5 + $0x70] sm:$0xff]
    %v88 = vld [vmem:[#allocation5 + $0x78] sm:$0xff]
    %v89 = vld [vmem:[#allocation5 + $0x80] sm:$0xff]
    %v90 = vld [vmem:[#allocation5 + $0x88] sm:$0xff]
    %v91 = vld [vmem:[#allocation5 + $0x90] sm:$0xff]
    %v92 = vld [vmem:[#allocation5 + $0x98] sm:$0xff]
    %v93 = vld [vmem:[#allocation5 + $0xa0] sm:$0xff]
    %v94 = vld [vmem:[#allocation5 + $0xa8] sm:$0xff]
    %v95 = vld [vmem:[#allocation5 + $0xb0] sm:$0xff]
    %v96 = vld [vmem:[#allocation5 + $0xb8] sm:$0xff]
    %v97 = vld [vmem:[#allocation5 + $0xc0] sm:$0xff]
    %v98 = vld [vmem:[#allocation5 + $0xc8] sm:$0xff]
    %v99 = vld [vmem:[#allocation5 + $0xd0] sm:$0xff]
    %v100 = vld [vmem:[#allocation5 + $0xd8] sm:$0xff]
    %v101 = vld [vmem:[#allocation5 + $0xe0] sm:$0xff]
    %v102 = vld [vmem:[#allocation5 + $0xe8] sm:$0xff]
    %v103 = vld [vmem:[#allocation5 + $0xf0] sm:$0xff]
    %v104 = vld [vmem:[#allocation5 + $0xf8] sm:$0xff]
    %v106 = vunpack.c.l.b16 %v72
    %v107 = vunpack.c.h.b16 %v72
    %v108 = vpack.c.b16 %v106, %v106
    %v109 = vpack.c.b16 %v107, %v107
    %v144 = vunpack.c.l.b16 %v73
    %v145 = vunpack.c.h.b16 %v73
    %v146 = vunpack.c.l.b16 %v74
    %v147 = vunpack.c.h.b16 %v74
    %v148 = vunpack.c.l.b16 %v75
    %v149 = vunpack.c.h.b16 %v75
    %v150 = vunpack.c.l.b16 %v76
    %v151 = vunpack.c.h.b16 %v76
    %v152 = vunpack.c.l.b16 %v77
    %v153 = vunpack.c.h.b16 %v77
    %v154 = vunpack.c.l.b16 %v78
    %v155 = vunpack.c.h.b16 %v78
    %v156 = vunpack.c.l.b16 %v79
    %v157 = vunpack.c.h.b16 %v79
    %v158 = vunpack.c.l.b16 %v80
    %v159 = vunpack.c.h.b16 %v80
    %v160 = vunpack.c.l.b16 %v81
    %v161 = vunpack.c.h.b16 %v81
    %v162 = vunpack.c.l.b16 %v82
    %v163 = vunpack.c.h.b16 %v82
    %v164 = vunpack.c.l.b16 %v83
    %v165 = vunpack.c.h.b16 %v83
    %v166 = vunpack.c.l.b16 %v84
    %v167 = vunpack.c.h.b16 %v84
    %v168 = vunpack.c.l.b16 %v85
    %v169 = vunpack.c.h.b16 %v85
    %v170 = vunpack.c.l.b16 %v86
    %v171 = vunpack.c.h.b16 %v86
    %v172 = vunpack.c.l.b16 %v87
    %v173 = vunpack.c.h.b16 %v87
    %v174 = vunpack.c.l.b16 %v88
    %v175 = vunpack.c.h.b16 %v88
    %v176 = vunpack.c.l.b16 %v89
    %v177 = vunpack.c.h.b16 %v89
    %v178 = vunpack.c.l.b16 %v90
    %v179 = vunpack.c.h.b16 %v90
    %v180 = vunpack.c.l.b16 %v91
    %v181 = vunpack.c.h.b16 %v91
    %v182 = vunpack.c.l.b16 %v92
    %v183 = vunpack.c.h.b16 %v92
    %v184 = vunpack.c.l.b16 %v93
    %v185 = vunpack.c.h.b16 %v93
    %v186 = vunpack.c.l.b16 %v94
    %v187 = vunpack.c.h.b16 %v94
    %v188 = vunpack.c.l.b16 %v95
    %v189 = vunpack.c.h.b16 %v95
    %v190 = vunpack.c.l.b16 %v96
    %v191 = vunpack.c.h.b16 %v96
    %v192 = vunpack.c.l.b16 %v97
    %v193 = vunpack.c.h.b16 %v97
    %v194 = vunpack.c.l.b16 %v98
    %v195 = vunpack.c.h.b16 %v98
    %v196 = vunpack.c.l.b16 %v99
    %v197 = vunpack.c.h.b16 %v99
    %v198 = vunpack.c.l.b16 %v100
    %v199 = vunpack.c.h.b16 %v100
    %v200 = vunpack.c.l.b16 %v101
    %v201 = vunpack.c.h.b16 %v101
    %v202 = vunpack.c.l.b16 %v102
    %v203 = vunpack.c.h.b16 %v102
    %v204 = vunpack.c.l.b16 %v103
    %v205 = vunpack.c.h.b16 %v103
    %v206 = vunpack.c.l.b16 %v104
    %v207 = vunpack.c.h.b16 %v104
    %v208 = vpack.c.b16 %v146, %v144
    %v209 = vpack.c.b16 %v147, %v145
    %v210 = vpack.c.b16 %v150, %v148
    %v211 = vpack.c.b16 %v151, %v149
    %v212 = vpack.c.b16 %v154, %v152
    %v213 = vpack.c.b16 %v155, %v153
    %v214 = vpack.c.b16 %v158, %v156
    %v215 = vpack.c.b16 %v159, %v157
    %v216 = vpack.c.b16 %v162, %v160
    %v217 = vpack.c.b16 %v163, %v161
    %v218 = vpack.c.b16 %v166, %v164
    %v219 = vpack.c.b16 %v167, %v165
    %v220 = vpack.c.b16 %v170, %v168
    %v221 = vpack.c.b16 %v171, %v169
    %v222 = vpack.c.b16 %v174, %v172
    %v223 = vpack.c.b16 %v175, %v173
    %v224 = vpack.c.b16 %v178, %v176
    %v225 = vpack.c.b16 %v179, %v177
    %v226 = vpack.c.b16 %v182, %v180
    %v227 = vpack.c.b16 %v183, %v181
    %v228 = vpack.c.b16 %v186, %v184
    %v229 = vpack.c.b16 %v187, %v185
    %v230 = vpack.c.b16 %v190, %v188
    %v231 = vpack.c.b16 %v191, %v189
    %v232 = vpack.c.b16 %v194, %v192
    %v233 = vpack.c.b16 %v195, %v193
    %v234 = vpack.c.b16 %v198, %v196
    %v235 = vpack.c.b16 %v199, %v197
    %v236 = vpack.c.b16 %v202, %v200
    %v237 = vpack.c.b16 %v203, %v201
    %v238 = vpack.c.b16 %v206, %v204
    %v239 = vpack.c.b16 %v207, %v205
    %272 = vmatprep.subr.bf16.mxu0 %v209
    %273 = vmatpush1.bf16.msra.mxu0 %v208
    %274 = vmatprep.subr.bf16.mxu0 %v211
    %275 = vmatpush1.bf16.msra.mxu0 %v210
    %276 = vmatprep.subr.bf16.mxu0 %v213
    %277 = vmatpush1.bf16.msra.mxu0 %v212
    %278 = vmatprep.subr.bf16.mxu0 %v215
    %279 = vmatpush1.bf16.msra.mxu0 %v214
    %280 = vmatprep.subr.bf16.mxu0 %v217
    %281 = vmatpush1.bf16.msra.mxu0 %v216
    %282 = vmatprep.subr.bf16.mxu0 %v219
    %283 = vmatpush1.bf16.msra.mxu0 %v218
    %284 = vmatprep.subr.bf16.mxu0 %v221
    %285 = vmatpush1.bf16.msra.mxu0 %v220
    %286 = vmatprep.subr.bf16.mxu0 %v223
    %287 = vmatpush1.bf16.msra.mxu0 %v222
    %288 = vmatprep.subr.bf16.mxu0 %v225
    %289 = vmatpush1.bf16.msra.mxu0 %v224
    %290 = vmatprep.subr.bf16.mxu0 %v227
    %291 = vmatpush1.bf16.msra.mxu0 %v226
    %292 = vmatprep.subr.bf16.mxu0 %v229
    %293 = vmatpush1.bf16.msra.mxu0 %v228
    %294 = vmatprep.subr.bf16.mxu0 %v231
    %295 = vmatpush1.bf16.msra.mxu0 %v230
    %296 = vmatprep.subr.bf16.mxu0 %v233
    %297 = vmatpush1.bf16.msra.mxu0 %v232
    %298 = vmatprep.subr.bf16.mxu0 %v235
    %299 = vmatpush1.bf16.msra.mxu0 %v234
    %300 = vmatprep.subr.bf16.mxu0 %v237
    %301 = vmatpush1.bf16.msra.mxu0 %v236
    %302 = vmatprep.subr.bf16.mxu0 %v239
    %303 = vmatpush1.bf16.msra.mxu0 %v238
    %304 = vmatprep.mubr.bf16.mxu0 %v109
    %305 = vmatmul.mubr.bf16.gmra.mrb[0].mxu0 %v108
    %v306 = vpop.f32.mrb[0].mxu0
    %v307 = vadd.f32 0.0, %v306
    %v308 = vpop.f32.mrb[0].mxu0
    %v309 = vadd.f32 0.0, %v308
    %v310 = vpop.f32.mrb[0].mxu0
    %v311 = vpop.f32.mrb[0].mxu0
    %312 = vdwg.mxu0
    %v313 = vadd.f32 %v70, %v307
    %v314 = vadd.f32 %v71, %v309
    %315 = vst [vmem:[#allocation8] sm:$0xff] %v313
    %316 = vst [vmem:[#allocation8 + $0x8] sm:$0xff] %v314
    // Predicated region
    $region30: #{tpu_custom_call.1} parent=1 // pred_check
      _
    $region31: #{tpu_custom_call.1} parent=1 // pred_check_branch
      %318 = sbr.rel (0) target = $region33
    $region32: #{tpu_custom_call.1} parent=1 // pred_region
      %s320 = ssub.s32 256, 256
      %321 = vsyncadd [#allocation4], %s320
      %s323 = sshll.u32 [#allocation8], 4
      %s324 = int_to_ptr.vmem [resolvable:$true] %s323
      %326 = dma.vmem_to_hbm [thread:$0]  %s324, 256, %s3, [#allocation4]
    $region33: #{tpu_custom_call.1} parent=1 // pred_fallthru
      _
    // Predicated region
    $region34: #{tpu_custom_call.1} parent=1 // pred_check
      _
    $region35: #{tpu_custom_call.1} parent=1 // pred_check_branch
      %328 = sbr.rel (0) target = $region37
    $region36: #{tpu_custom_call.1} parent=1 // pred_region
      %329 = dma.done [#allocation4], 256
    $region37: #{tpu_custom_call.1} parent=1 // pred_fallthru
      _
    %330 = vsyncpa [#allocation3], 1
    %331 = vsyncpa [#allocation6], 1
    %332 = vsyncpa [#allocation4], 1

</llo_original>
